<compile_context>
chip_gen: v7x
topology: tpu7x:2x2x1
jax: 0.10.0
libtpu: 0.0.40
codegen_flags: <defaults>
</compile_context>

<pallas_src>
import functools

import jax
import jax.numpy as jnp
from jax.experimental import pallas as pl
from jax.experimental.pallas import tpu as pltpu


def _channel_attention_kernel(x_ref, w1_ref, w2_ref, o_ref,
                              sum_acc, max_acc, *, hw, thw, mask_tail):
    # x_ref : (tb, C, thw)  native dtype block of the flattened NCHW input
    # w1_ref: (C, Ch)  f32  (conv1 weight, pre-transposed)
    # w2_ref: (Ch, C)  f32  (conv2 weight, pre-transposed)
    # o_ref : (tb, C)        output block (resident across the spatial axis)
    # sum_acc/max_acc: (tb, C) f32 VMEM scratch accumulators
    k = pl.program_id(1)
    last_k = pl.num_programs(1) - 1

    @pl.when(k == 0)
    def _init():
        sum_acc[...] = jnp.zeros_like(sum_acc)
        max_acc[...] = jnp.full_like(max_acc, -jnp.inf)

    # Native-dtype DMA; accumulate in f32.
    x = x_ref[...].astype(jnp.float32)                        # (tb, C, thw)

    if mask_tail:
        # Last spatial tile may be padded past the true HW extent.
        col = k * thw + jax.lax.broadcasted_iota(jnp.int32, x.shape, 2)
        valid = col < hw
        x_sum = jnp.where(valid, x, 0.0)
        x_max = jnp.where(valid, x, -jnp.inf)
    else:
        x_sum = x
        x_max = x

    sum_acc[...] += jnp.sum(x_sum, axis=-1)
    max_acc[...] = jnp.maximum(max_acc[...], jnp.max(x_max, axis=-1))

    @pl.when(k == last_k)
    def _finalize():
        tb = sum_acc.shape[0]
        avg = sum_acc[...] * (1.0 / hw)                        # (tb, C)
        mx = max_acc[...]                                      # (tb, C)
        # Fused FC over the stacked (avg; max) rows: one matmul per layer.
        v = jnp.concatenate([avg, mx], axis=0)                 # (2*tb, C)
        h = jnp.dot(v, w1_ref[...], preferred_element_type=jnp.float32)
        h = jnp.maximum(h, 0.0)                                # ReLU
        y = jnp.dot(h, w2_ref[...], preferred_element_type=jnp.float32)  # (2*tb, C)
        logits = y[:tb] + y[tb:]
        o_ref[...] = jax.nn.sigmoid(logits).astype(o_ref.dtype)


def channel_attention(x_nchw, w1_conv, w2_conv, *, thw_cap=512):
    """x_nchw: (B, C, H, W); w1_conv: (C//16, C, 1, 1); w2_conv: (C, C//16, 1, 1)."""
    B, C, H, W = x_nchw.shape
    Ch = w1_conv.shape[0]
    HW = H * W

    # Keep the activation in its native dtype (no wrapper-side upcast pass).
    x3 = x_nchw.reshape(B, C, HW)

    # 1x1 conv on (B, C_in, 1, 1) == matmul with weight (C_out, C_in); pre-transpose.
    w1_t = w1_conv.reshape(Ch, C).T.astype(jnp.float32)        # (C, Ch)
    w2_t = w2_conv.reshape(C, Ch).T.astype(jnp.float32)        # (Ch, C)

    # Spatial tile: full HW if small, otherwise a 128-lane multiple (masked tail).
    if HW <= thw_cap:
        thw = HW
    else:
        thw = max((thw_cap // 128) * 128, 128)
    mask_tail = (HW % thw) != 0

    # Batch tile: full B, or a sublane-aligned 8 when B is large and divisible.
    tb = 8 if (B > 8 and B % 8 == 0) else B

    grid = (pl.cdiv(B, tb), pl.cdiv(HW, thw))

    kernel = functools.partial(_channel_attention_kernel,
                               hw=HW, thw=thw, mask_tail=mask_tail)

    out = pl.pallas_call(
        kernel,
        out_shape=jax.ShapeDtypeStruct((B, C), x_nchw.dtype),
        grid=grid,
        in_specs=[
            pl.BlockSpec((tb, C, thw), lambda b, k: (b, 0, k)),
            pl.BlockSpec((C, Ch), lambda b, k: (0, 0)),
            pl.BlockSpec((Ch, C), lambda b, k: (0, 0)),
        ],
        out_specs=pl.BlockSpec((tb, C), lambda b, k: (b, 0)),
        scratch_shapes=[
            pltpu.VMEM((tb, C), jnp.float32),   # running sum
            pltpu.VMEM((tb, C), jnp.float32),   # running max
        ],
        compiler_params=pltpu.CompilerParams(
            dimension_semantics=("parallel", "arbitrary"),
            vmem_limit_bytes=64 * 1024 * 1024,
        ),
    )(x3, w1_t, w2_t)

    return out.reshape(B, C, 1, 1)


def channel_attention_ref(x_nchw, w1_conv, w2_conv):
    """Pure-JAX reference mirroring the PyTorch forward."""
    B, C, H, W = x_nchw.shape
    Ch = w1_conv.shape[0]
    xf = x_nchw.astype(jnp.float32)
    avg = jnp.mean(xf, axis=(2, 3))               # (B, C)
    mx = jnp.max(xf, axis=(2, 3))                 # (B, C)
    w1 = w1_conv.reshape(Ch, C).astype(jnp.float32)
    w2 = w2_conv.reshape(C, Ch).astype(jnp.float32)

    def fc(v):
        return jnp.maximum(v @ w1.T, 0.0) @ w2.T

    out = jax.nn.sigmoid(fc(avg) + fc(mx)).astype(x_nchw.dtype)
    return out.reshape(B, C, 1, 1)


if __name__ == "__main__":
    # in_planes must be >= 16 (fc squeezes to in_planes // 16).
    B, C, H, W = 2, 32, 16, 16
    Ch = C // 16

    key = jax.random.PRNGKey(0)
    kx, k1, k2 = jax.random.split(key, 3)
    x = jax.random.normal(kx, (B, C, H, W), dtype=jnp.float32)
    # Deterministic synthetic conv weights (shapes match nn.Conv2d(.., 1, bias=False)).
    w1 = jax.random.normal(k1, (Ch, C, 1, 1), dtype=jnp.float32) * 0.1
    w2 = jax.random.normal(k2, (C, Ch, 1, 1), dtype=jnp.float32) * 0.1

    # thw_cap=128 -> HW=256 gives 2 spatial tiles: exercises init/accumulate/finalize.
    out = channel_attention(x, w1, w2, thw_cap=128)
    out = jax.block_until_ready(out)
    ref = channel_attention_ref(x, w1, w2)
    assert out.shape == (B, C, 1, 1)
    assert jnp.allclose(out, ref, atol=1e-5, rtol=1e-5), "mismatch vs reference (even HW)"

    # Ragged spatial extent (13x13 = 169, not a multiple of 128): exercises masked tail.
    x2 = jax.random.normal(kx, (B, C, 13, 13), dtype=jnp.float32)
    out2 = jax.block_until_ready(channel_attention(x2, w1, w2, thw_cap=128))
    ref2 = channel_attention_ref(x2, w1, w2)
    assert jnp.allclose(out2, ref2, atol=1e-5, rtol=1e-5), "mismatch vs reference (ragged HW)"

    print("KERNEL_OK")
</pallas_src>

<mosaic_0001>
module attributes {stable_mosaic.version = 11 : i64} {
  func.func @_channel_attention_kernel(%arg0: i32, %arg1: i32, %arg2: memref<2x32x128xf32, #tpu.memory_space<vmem>>, %arg3: memref<32x2xf32, #tpu.memory_space<vmem>>, %arg4: memref<2x32xf32, #tpu.memory_space<vmem>>, %arg5: memref<2x32xf32, #tpu.memory_space<vmem>>, %arg6: memref<2x32xf32, #tpu.memory_space<vmem>>, %arg7: memref<2x32xf32, #tpu.memory_space<vmem>>) attributes {dimension_semantics = [#tpu.dimension_semantics<parallel>, #tpu.dimension_semantics<arbitrary>], iteration_bounds = array<i64: 1, 2>, scalar_prefetch = 0 : i64, scratch_operands = 2 : i64, tpu.core_type = #tpu.core_type<tc>, window_params = [{transform_indices = @transform_0, window_bounds = array<i64: 2, 32, 128>}, {pipeline_mode = #tpu.pipeline_mode<synchronous>, transform_indices = @transform_1, window_bounds = array<i64: 32, 2>}, {pipeline_mode = #tpu.pipeline_mode<synchronous>, transform_indices = @transform_2, window_bounds = array<i64: 2, 32>}, {transform_indices = @transform_3, window_bounds = array<i64: 2, 32>}]} {
    %c0_i32 = arith.constant 0 : i32
    %0 = arith.cmpi eq, %arg1, %c0_i32 : i32
    %1 = arith.extui %0 : i1 to i32
    %c0_i32_0 = arith.constant 0 : i32
    %2 = arith.cmpi ne, %1, %c0_i32_0 : i32
    scf.if %2 {
      %cst_13 = arith.constant 0.000000e+00 : f32
      %15 = vector.broadcast %cst_13 : f32 to vector<2x32xf32>
      %c0_14 = arith.constant 0 : index
      %c0_15 = arith.constant 0 : index
      %16 = vector.load %arg6[%c0_14, %c0_15] : memref<2x32xf32, #tpu.memory_space<vmem>>, vector<2x32xf32>
      tpu.vector_store %arg6[%c0_14, %c0_15], %15 {strides = array<i32>} : memref<2x32xf32, #tpu.memory_space<vmem>>, vector<2x32xf32>,
      %cst_16 = arith.constant 0xFF800000 : f32
      %17 = vector.broadcast %cst_16 : f32 to vector<2x32xf32>
      %c0_17 = arith.constant 0 : index
      %c0_18 = arith.constant 0 : index
      %18 = vector.load %arg7[%c0_17, %c0_18] : memref<2x32xf32, #tpu.memory_space<vmem>>, vector<2x32xf32>
      tpu.vector_store %arg7[%c0_17, %c0_18], %17 {strides = array<i32>} : memref<2x32xf32, #tpu.memory_space<vmem>>, vector<2x32xf32>,
    } else {
    }
    %c0 = arith.constant 0 : index
    %c0_1 = arith.constant 0 : index
    %c0_2 = arith.constant 0 : index
    %3 = vector.load %arg2[%c0, %c0_1, %c0_2] : memref<2x32x128xf32, #tpu.memory_space<vmem>>, vector<2x32x128xf32>
    %c0_3 = arith.constant 0 : index
    %c0_4 = arith.constant 0 : index
    %4 = vector.load %arg6[%c0_3, %c0_4] : memref<2x32xf32, #tpu.memory_space<vmem>>, vector<2x32xf32>
    %cst = arith.constant dense<0.000000e+00> : vector<2x32xf32>
    %5 = vector.multi_reduction <add>, %3, %cst [2] : vector<2x32x128xf32> to vector<2x32xf32>
    %6 = arith.addf %4, %5 : vector<2x32xf32>
    %c0_5 = arith.constant 0 : index
    %c0_6 = arith.constant 0 : index
    %7 = vector.load %arg6[%c0_5, %c0_6] : memref<2x32xf32, #tpu.memory_space<vmem>>, vector<2x32xf32>
    tpu.vector_store %arg6[%c0_5, %c0_6], %6 {strides = array<i32>} : memref<2x32xf32, #tpu.memory_space<vmem>>, vector<2x32xf32>,
    %c0_7 = arith.constant 0 : index
    %c0_8 = arith.constant 0 : index
    %8 = vector.load %arg7[%c0_7, %c0_8] : memref<2x32xf32, #tpu.memory_space<vmem>>, vector<2x32xf32>
    %cst_9 = arith.constant dense<0xFF800000> : vector<2x32xf32>
    %9 = vector.multi_reduction <maximumf>, %3, %cst_9 [2] : vector<2x32x128xf32> to vector<2x32xf32>
    %10 = arith.maximumf %8, %9 : vector<2x32xf32>
    %c0_10 = arith.constant 0 : index
    %c0_11 = arith.constant 0 : index
    %11 = vector.load %arg7[%c0_10, %c0_11] : memref<2x32xf32, #tpu.memory_space<vmem>>, vector<2x32xf32>
    tpu.vector_store %arg7[%c0_10, %c0_11], %10 {strides = array<i32>} : memref<2x32xf32, #tpu.memory_space<vmem>>, vector<2x32xf32>,
    %c1_i32 = arith.constant 1 : i32
    %12 = arith.cmpi eq, %arg1, %c1_i32 : i32
    %13 = arith.extui %12 : i1 to i32
    %c0_i32_12 = arith.constant 0 : i32
    %14 = arith.cmpi ne, %13, %c0_i32_12 : i32
    scf.if %14 {
      %c0_13 = arith.constant 0 : index
      %c0_14 = arith.constant 0 : index
      %15 = vector.load %arg6[%c0_13, %c0_14] : memref<2x32xf32, #tpu.memory_space<vmem>>, vector<2x32xf32>
      %cst_15 = arith.constant 3.906250e-03 : f32
      %16 = vector.broadcast %cst_15 : f32 to vector<2x32xf32>
      %17 = arith.mulf %15, %16 : vector<2x32xf32>
      %c0_16 = arith.constant 0 : index
      %c0_17 = arith.constant 0 : index
      %18 = vector.load %arg7[%c0_16, %c0_17] : memref<2x32xf32, #tpu.memory_space<vmem>>, vector<2x32xf32>
      %19 = tpu.concatenate %17, %18 in 0 : vector<2x32xf32>, vector<2x32xf32> -> vector<4x32xf32>
      %c0_18 = arith.constant 0 : index
      %c0_19 = arith.constant 0 : index
      %20 = vector.load %arg3[%c0_18, %c0_19] : memref<32x2xf32, #tpu.memory_space<vmem>>, vector<32x2xf32>
      %cst_20 = arith.constant dense<0.000000e+00> : vector<4x2xf32>
      %21 = tpu.matmul %19, %20, %cst_20 {dimension_numbers = #tpu.dot_dimension_numbers<[1], [0], [0], [1], [0, 0, 1, 1], [], []>} : vector<4x32xf32>, vector<32x2xf32>, vector<4x2xf32> -> vector<4x2xf32>
      %cst_21 = arith.constant 0.000000e+00 : f32
      %22 = vector.broadcast %cst_21 : f32 to vector<4x2xf32>
      %23 = arith.maximumf %21, %22 : vector<4x2xf32>
      %c0_22 = arith.constant 0 : index
      %c0_23 = arith.constant 0 : index
      %24 = vector.load %arg4[%c0_22, %c0_23] : memref<2x32xf32, #tpu.memory_space<vmem>>, vector<2x32xf32>
      %cst_24 = arith.constant dense<0.000000e+00> : vector<4x32xf32>
      %25 = tpu.matmul %23, %24, %cst_24 {dimension_numbers = #tpu.dot_dimension_numbers<[1], [0], [0], [1], [0, 0, 1, 1], [], []>} : vector<4x2xf32>, vector<2x32xf32>, vector<4x32xf32> -> vector<4x32xf32>
      %26 = vector.extract_strided_slice %25 {offsets = [0, 0], sizes = [2, 32], strides = [1, 1]} : vector<4x32xf32> to vector<2x32xf32>
      %27 = vector.extract_strided_slice %25 {offsets = [2, 0], sizes = [2, 32], strides = [1, 1]} : vector<4x32xf32> to vector<2x32xf32>
      %28 = arith.addf %26, %27 : vector<2x32xf32>
      %29 = arith.negf %28 : vector<2x32xf32>
      %30 = math.exp %29 : vector<2x32xf32>
      %cst_25 = arith.constant 1.000000e+00 : f32
      %31 = vector.broadcast %cst_25 : f32 to vector<2x32xf32>
      %32 = arith.addf %31, %30 : vector<2x32xf32>
      %33 = arith.divf %31, %32 : vector<2x32xf32>
      %c0_26 = arith.constant 0 : index
      %c0_27 = arith.constant 0 : index
      %34 = vector.load %arg5[%c0_26, %c0_27] : memref<2x32xf32, #tpu.memory_space<vmem>>, vector<2x32xf32>
      tpu.vector_store %arg5[%c0_26, %c0_27], %33 {strides = array<i32>} : memref<2x32xf32, #tpu.memory_space<vmem>>, vector<2x32xf32>,
    } else {
    }
    return
  }
  func.func @transform_0(%arg0: i32, %arg1: i32) -> (i32, i32, i32) {
    %c0_i32 = arith.constant 0 : i32
    %c0_i32_0 = arith.constant 0 : i32
    return %arg0, %c0_i32, %arg1 : i32, i32, i32
  }
  func.func @transform_1(%arg0: i32, %arg1: i32) -> (i32, i32) {
    %c0_i32 = arith.constant 0 : i32
    %c0_i32_0 = arith.constant 0 : i32
    %c0_i32_1 = arith.constant 0 : i32
    return %c0_i32, %c0_i32_0 : i32, i32
  }
  func.func @transform_2(%arg0: i32, %arg1: i32) -> (i32, i32) {
    %c0_i32 = arith.constant 0 : i32
    %c0_i32_0 = arith.constant 0 : i32
    %c0_i32_1 = arith.constant 0 : i32
    return %c0_i32, %c0_i32_0 : i32, i32
  }
  func.func @transform_3(%arg0: i32, %arg1: i32) -> (i32, i32) {
    %c0_i32 = arith.constant 0 : i32
    %c0_i32_0 = arith.constant 0 : i32
    return %arg0, %c0_i32 : i32, i32
  }
}

</mosaic_0001>

<llo_original>
// kernel: tpu_custom_call.1
$region0: #{tpu_custom_call.1}
  #allocation0 [shape = 'u32[]', space=smem, size = 0x4, offset = 0x4, fixed_abs, tag = 'smem constant byte address 0x4 - core index']
  #allocation1 [shape = 'u32[144,128]{1,0:T(1,128)}', space=vmem, size = 0x12000, scoped, tag = 'internal scratch']
  #allocation2 [shape = 'f32[2,32]{1,0:T(2,128)}', space=vmem, size = 0x400, scoped, tag = 'scratch operand']
  #allocation3 [shape = 'f32[2,32]{1,0:T(2,128)}', space=vmem, size = 0x400, scoped, tag = 'scratch operand']
  %s0 = inlined_call_operand.hbm [shape: f32[2,32,256], index: 0, kind: input, shape index: {}]
  %s1 = inlined_call_operand.hbm [shape: f32[32,2], index: 1, kind: input, shape index: {}]
  %s2 = inlined_call_operand.hbm [shape: f32[2,32], index: 2, kind: input, shape index: {}]
  %s3 = inlined_call_operand.hbm [shape: f32[2,32], index: 3, kind: output, shape index: {}]
  %s4 = sld [smem:[#allocation0]]
  $region65: #{tpu_custom_call.1} parent=0
    _
  %s6 = ssub.s32 1, %s4
  %s7 = scalar_select 0, %s6, %s4
  $region1: #{tpu_custom_call.1} parent=0
    #allocation4 [shape = 'u8[65536]{0}', space=vmem, size = 0x10000, scoped, tag = 'input window, operand 0']
    #allocation5 [shape = 's32[2]{0}', space=sflag, size = 0x8, scoped, tag = 'scoped memory for tpu_custom_call.1']
    #allocation6 [shape = 's32[2]{0}', space=sflag, size = 0x8, scoped, tag = 'scoped memory for tpu_custom_call.1']
    #allocation7 [shape = 'u8[16384]{0}', space=vmem, size = 0x4000, scoped, tag = 'input window, operand 1, single buffered']
    #allocation8 [shape = 's32[1]{0}', space=sflag, size = 0x4, scoped, tag = 'scoped memory for tpu_custom_call.1']
    #allocation9 [shape = 'u8[1024]{0}', space=vmem, size = 0x400, scoped, tag = 'input window, operand 2, single buffered']
    #allocation10 [shape = 'u8[1024]{0}', space=vmem, size = 0x400, scoped, tag = 'output window, operand 0, single buffered']
    %8 = vsyncpa [#allocation5], 0
    %s9 = scalar_lea.sflag [#allocation5], 1
    %10 = vsyncpa %s9, 0
    %11 = vsyncpa [#allocation8], 0
    %12 = vsyncpa [#allocation6], 0
    loop: start=0, step=1, limit=4
    $region2: #{tpu_custom_call.1} parent=1 // loop_pre_header
      _
    $region3: #{tpu_custom_call.1} parent=1 // loop_header
      %s14 = sphi 0, %s18
      %p15 = scmp.ge.s32.totalorder %s14, 4
      %s21 = sphi 0, %s33
      %s22 = sphi 0, %s29
      %s23 = sphi 0, %s21
      %s24 = sphi 0, %s22
      %s25 = sphi 0, %s23
      %s26 = sphi 0, %s24
      %s38 = sphi 0, %s40
      %s41 = sphi 0, %s38
      %s42 = sphi 0, %s41
      %s58 = sphi 0, %s42
      %s62 = sphi 0, %s62
      %s64 = sphi 0, %s62
      %s65 = sphi 0, %s64
      %s79 = sphi 0, %s65
      %s83 = sphi 0, %s83
      %s85 = sphi 0, %s83
      %s86 = sphi 0, %s85
      %s100 = sphi 0, %s86
      %s106 = sphi 0, %s108
      %s109 = sphi 0, %s106
      %s110 = sphi 0, %s109
      %s126 = sphi 0, %s110
    $region4: #{tpu_custom_call.1} parent=1 // loop_header_branch
      %17 = sbr.rel (%p15) target = $region8
    $region5: #{tpu_custom_call.1} parent=1 // loop_body
      %s19 = ssub.s32 %s14, 1
      %s20 = ssub.s32 %s14, 2
      %s27 = sadd.s32 1, %s22
      %p28 = scmp.ge.s32.totalorder %s27, 2
      %s29 = scalar_select %p28, 0, %s27
      %s30 = sadd.s32 1, %s21
      %s31 = scalar_select %p28, %s30, %s21
      %p32 = scmp.ge.s32.totalorder %s31, 1
      %s33 = scalar_select %p32, 0, %s31
      %s34 = ssub.s32 %s21, %s33
      %s35 = ssub.s32 %s22, %s29
      %s36 = sor.u32 %s34, %s35
      %p37 = scmp.eq.s32.totalorder %s36, 0
      %s39 = sadd.s32 %s38, 1
      %s40 = scalar_select %p37, %s38, %s39
      %p43 = pneg %p37
      %p44 = scmp.eq.s32.totalorder %s14, 1
      %p45 = por %p43, %p44
      %p46 = scmp.ne.s32.totalorder %s38, %s41
      %p47 = scmp.eq.s32.totalorder %s14, 0
      %p48 = por %p46, %p47
      %p49 = scmp.ne.s32.totalorder %s38, %s41
      %p50 = scmp.eq.s32.totalorder %s19, 1
      %p51 = por %p49, %p50
      %p52 = scmp.ne.s32.totalorder %s41, %s42
      %p53 = scmp.eq.s32.totalorder %s19, 0
      %p54 = por %p52, %p53
      %p55 = scmp.ne.s32.totalorder %s41, %s42
      %p56 = scmp.eq.s32.totalorder %s20, 1
      %p57 = por %p55, %p56
      %p59 = scmp.ne.s32.totalorder %s42, %s58
      %p60 = scmp.eq.s32.totalorder %s20, 0
      %p61 = por %p59, %p60
      %s63 = sadd.s32 %s62, 1
      %p66 = scmp.eq.s32.totalorder %s14, 1
      %p67 = scmp.ne.s32.totalorder %s62, %s64
      %p68 = scmp.eq.s32.totalorder %s14, 0
      %p69 = por %p67, %p68
      %p70 = scmp.ne.s32.totalorder %s62, %s64
      %p71 = scmp.eq.s32.totalorder %s19, 1
      %p72 = por %p70, %p71
      %p73 = scmp.ne.s32.totalorder %s64, %s65
      %p74 = scmp.eq.s32.totalorder %s19, 0
      %p75 = por %p73, %p74
      %p76 = scmp.ne.s32.totalorder %s64, %s65
      %p77 = scmp.eq.s32.totalorder %s20, 1
      %p78 = por %p76, %p77
      %p80 = scmp.ne.s32.totalorder %s65, %s79
      %p81 = scmp.eq.s32.totalorder %s20, 0
      %p82 = por %p80, %p81
      %s84 = sadd.s32 %s83, 1
      %p87 = scmp.eq.s32.totalorder %s14, 1
      %p88 = scmp.ne.s32.totalorder %s83, %s85
      %p89 = scmp.eq.s32.totalorder %s14, 0
      %p90 = por %p88, %p89
      %p91 = scmp.ne.s32.totalorder %s83, %s85
      %p92 = scmp.eq.s32.totalorder %s19, 1
      %p93 = por %p91, %p92
      %p94 = scmp.ne.s32.totalorder %s85, %s86
      %p95 = scmp.eq.s32.totalorder %s19, 0
      %p96 = por %p94, %p95
      %p97 = scmp.ne.s32.totalorder %s85, %s86
      %p98 = scmp.eq.s32.totalorder %s20, 1
      %p99 = por %p97, %p98
      %p101 = scmp.ne.s32.totalorder %s86, %s100
      %p102 = scmp.eq.s32.totalorder %s20, 0
      %p103 = por %p101, %p102
      %s104 = ssub.s32 %s21, %s33
      %p105 = scmp.eq.s32.totalorder %s104, 0
      %s107 = sadd.s32 %s106, 1
      %s108 = scalar_select %p105, %s106, %s107
      %p111 = pneg %p105
      %p112 = scmp.eq.s32.totalorder %s14, 1
      %p113 = por %p111, %p112
      %p114 = scmp.ne.s32.totalorder %s106, %s109
      %p115 = scmp.eq.s32.totalorder %s14, 0
      %p116 = por %p114, %p115
      %p117 = scmp.ne.s32.totalorder %s106, %s109
      %p118 = scmp.eq.s32.totalorder %s19, 1
      %p119 = por %p117, %p118
      %p120 = scmp.ne.s32.totalorder %s109, %s110
      %p121 = scmp.eq.s32.totalorder %s19, 0
      %p122 = por %p120, %p121
      %p123 = scmp.ne.s32.totalorder %s109, %s110
      %p124 = scmp.eq.s32.totalorder %s20, 1
      %p125 = por %p123, %p124
      %p127 = scmp.ne.s32.totalorder %s110, %s126
      %p128 = scmp.eq.s32.totalorder %s20, 0
      %p129 = por %p127, %p128
      %p130 = scmp.le.s32.totalorder 1, %s14
      %p131 = scmp.lt.s32.totalorder %s14, 3
      %p132 = pnand %p130, %p131
      %p133 = pneg %p132
      // Predicated region
      $region9: #{tpu_custom_call.1} parent=5 // pred_check
        _
      $region10: #{tpu_custom_call.1} parent=5 // pred_check_branch
        %135 = sbr.rel (%p132) target = $region12
      $region11: #{tpu_custom_call.1} parent=5 // pred_region
        %s136 = ssub.s32 %s14, 1
        // Predicated region
        $region13: #{tpu_custom_call.1} parent=11 // pred_check
          %p137 = pneg %p75
        $region14: #{tpu_custom_call.1} parent=11 // pred_check_branch
          %139 = sbr.rel (%p137) target = $region16
        $region15: #{tpu_custom_call.1} parent=11 // pred_region
          %s141 = ssub.s32 512, 512
          %142 = vsyncadd [#allocation8], %s141
          %s143 = sshll.u32 [#allocation7], 4
          %s144 = int_to_ptr.vmem [resolvable:$true] %s143
          %149 = dma.hbm_to_vmem [thread:$0]  %s1, 512, %s144, [#allocation8], 128, 128, 8
        $region16: #{tpu_custom_call.1} parent=11 // pred_fallthru
          _
        // Predicated region
        $region17: #{tpu_custom_call.1} parent=11 // pred_check
          %p150 = pneg %p96
        $region18: #{tpu_custom_call.1} parent=11 // pred_check_branch
          %152 = sbr.rel (%p150) target = $region20
        $region19: #{tpu_custom_call.1} parent=11 // pred_region
          %s154 = ssub.s32 32, 32
          %155 = vsyncadd [#allocation8], %s154
          %s157 = sshll.u32 [#allocation9], 4
          %s158 = int_to_ptr.vmem [resolvable:$true] %s157
          %160 = dma.hbm_to_vmem [thread:$0]  %s2, 32, %s158, [#allocation8]
        $region20: #{tpu_custom_call.1} parent=11 // pred_fallthru
          _
      $region12: #{tpu_custom_call.1} parent=5 // pred_fallthru
        _
      %p161 = scmp.lt.s32.totalorder %s14, 2
      // Predicated region
      $region21: #{tpu_custom_call.1} parent=5 // pred_check
        %p162 = pneg %p161
      $region22: #{tpu_custom_call.1} parent=5 // pred_check_branch
        %164 = sbr.rel (%p162) target = $region24
      $region23: #{tpu_custom_call.1} parent=5 // pred_region
        // Predicated region
        $region25: #{tpu_custom_call.1} parent=23 // pred_check
          %p165 = pneg %p48
        $region26: #{tpu_custom_call.1} parent=23 // pred_check_branch
          %167 = sbr.rel (%p165) target = $region28
        $region27: #{tpu_custom_call.1} parent=23 // pred_region
          %s168 = sand.u32 %s38, 1
          %s169 = scalar_lea.sflag [#allocation5], %s168
          %s170 = sand.u32 %s38, 1
          %s171 = smul.addr %s170, 64
          %s172 = scalar_lea.vmem [#allocation4], %s171
          %s173 = smul.u32 2, %s21
          %s175 = ssub.s32 1024, 1024
          %176 = vsyncadd %s169, %s175
          %s177 = smul.addr %s173, 8
          %s178 = sadd.s32 %s22, %s177
          %s179 = smul.addr %s178, 128
          %s180 = scalar_lea.hbm %s0, %s179
          %s181 = sshll.u32 %s172, 4
          %s182 = int_to_ptr.vmem [resolvable:$true] %s181
          %187 = dma.hbm_to_vmem [thread:$0]  %s180, 1024, %s182, %s169, 256, 128, 8
        $region28: #{tpu_custom_call.1} parent=23 // pred_fallthru
          _
      $region24: #{tpu_custom_call.1} parent=5 // pred_fallthru
        _
      %p188 = scmp.le.s32.totalorder 1, %s14
      %p189 = scmp.lt.s32.totalorder %s14, 3
      %p190 = pnand %p188, %p189
      %p191 = pneg %p190
      // Predicated region
      $region29: #{tpu_custom_call.1} parent=5 // pred_check
        _
      $region30: #{tpu_custom_call.1} parent=5 // pred_check_branch
        %193 = sbr.rel (%p190) target = $region32
      $region31: #{tpu_custom_call.1} parent=5 // pred_region
        %s194 = ssub.s32 %s14, 1
        %s195 = sand.u32 %s41, 1
        %s196 = scalar_lea.sflag [#allocation5], %s195
        %s197 = sand.u32 %s41, 1
        %s198 = smul.addr %s197, 64
        %s199 = scalar_lea.vmem [#allocation4], %s198
        // Predicated region
        $region33: #{tpu_custom_call.1} parent=31 // pred_check
          %p200 = pneg %p54
        $region34: #{tpu_custom_call.1} parent=31 // pred_check_branch
          %202 = sbr.rel (%p200) target = $region36
        $region35: #{tpu_custom_call.1} parent=31 // pred_region
          %203 = dma.done %s196, 1024
        $region36: #{tpu_custom_call.1} parent=31 // pred_fallthru
          _
        // Predicated region
        $region37: #{tpu_custom_call.1} parent=31 // pred_check
          %p204 = pneg %p75
        $region38: #{tpu_custom_call.1} parent=31 // pred_check_branch
          %206 = sbr.rel (%p204) target = $region40
        $region39: #{tpu_custom_call.1} parent=31 // pred_region
          %207 = dma.done [#allocation8], 512
        $region40: #{tpu_custom_call.1} parent=31 // pred_fallthru
          _
        // Predicated region
        $region41: #{tpu_custom_call.1} parent=31 // pred_check
          %p208 = pneg %p96
        $region42: #{tpu_custom_call.1} parent=31 // pred_check_branch
          %210 = sbr.rel (%p208) target = $region44
        $region43: #{tpu_custom_call.1} parent=31 // pred_region
          %211 = dma.done [#allocation8], 32
        $region44: #{tpu_custom_call.1} parent=31 // pred_fallthru
          _
        %s212 = sand.u32 %s41, 1
        %s213 = scalar_lea.sflag [#allocation5], %s212
        %s214 = sand.u32 %s41, 1
        %s215 = smul.addr %s214, 64
        %s216 = scalar_lea.vmem [#allocation4], %s215
        %p217 = pneg %p54
        %p218 = pneg %p51
        %p219 = pneg %p75
        %p220 = pneg %p72
        %p221 = pneg %p96
        %p222 = pneg %p93
        %p223 = pneg %p122
        %p224 = pneg %p119
        %s225 = smul.u32 2, %s23
        %p226 = scmp.eq.s32.totalorder %s24, 0
        // Predicated region
        $region45: #{tpu_custom_call.1} parent=31 // pred_check
          %p227 = pneg %p226
        $region46: #{tpu_custom_call.1} parent=31 // pred_check_branch
          %229 = sbr.rel (%p227) target = $region48
        $region47: #{tpu_custom_call.1} parent=31 // pred_region
          %vm230 = vcmask 254976
          %231 = vst.msk [vmem:[#allocation2] sm:$0x3] %vm230, 0.0
          %232 = vst.msk [vmem:[#allocation3] sm:$0x3] %vm230, -inf
        $region48: #{tpu_custom_call.1} parent=31 // pred_fallthru
          _
        %v233 = vld [vmem:[%s199] sm:$0xff]
        %v234 = vld [vmem:[%s199 + $0x8] sm:$0xff]
        %v235 = vld [vmem:[%s199 + $0x10] sm:$0xff]
        %v236 = vld [vmem:[%s199 + $0x18] sm:$0xff]
        %v237 = vld [vmem:[%s199 + $0x20] sm:$0xff]
        %v238 = vld [vmem:[%s199 + $0x28] sm:$0xff]
        %v239 = vld [vmem:[%s199 + $0x30] sm:$0xff]
        %v240 = vld [vmem:[%s199 + $0x38] sm:$0xff]
        %v241 = vld [vmem:[#allocation2] sm:$0x3]
        %242 = vadd.xlane.f32.xlu0 %v233
        %v243 = vpop.xlane.xlu0 %242
        %244 = vadd.xlane.f32.xlu0 %v234
        %v245 = vpop.xlane.xlu0 %244
        %246 = vadd.xlane.f32.xlu0 %v235
        %v247 = vpop.xlane.xlu0 %246
        %248 = vadd.xlane.f32.xlu0 %v236
        %v249 = vpop.xlane.xlu0 %248
        %250 = vadd.xlane.f32.xlu0 %v237
        %v251 = vpop.xlane.xlu0 %250
        %252 = vadd.xlane.f32.xlu0 %v238
        %v253 = vpop.xlane.xlu0 %252
        %254 = vadd.xlane.f32.xlu0 %v239
        %v255 = vpop.xlane.xlu0 %254
        %256 = vadd.xlane.f32.xlu0 %v240
        %v257 = vpop.xlane.xlu0 %256
        %v266 = vlaneseq
        %v267 = vand.u32 %v266, 127
        %v268 = vlaneseq
        %v269 = vshrl.u32 %v268, 7
        %v270 = vsub.s32 %v267, %v269
        %v271 = vrot.slane %v243, %v270
        %v272 = vadd.s32 %v267, 4294967288
        %v273 = vlaneseq
        %v274 = vshrl.u32 %v273, 7
        %v275 = vsub.s32 %v272, %v274
        %v276 = vrot.slane %v245, %v275
        %vm277 = vcmask 130112
        %v278 = vsel %vm277, %v276, %v271
        %v279 = vadd.s32 %v267, 4294967280
        %v280 = vlaneseq
        %v281 = vshrl.u32 %v280, 7
        %v282 = vsub.s32 %v279, %v281
        %v283 = vrot.slane %v247, %v282
        %vm284 = vcmask 195712
        %v285 = vsel %vm284, %v283, %v278
        %v286 = vadd.s32 %v267, 4294967272
        %v287 = vlaneseq
        %v288 = vshrl.u32 %v287, 7
        %v289 = vsub.s32 %v286, %v288
        %v290 = vrot.slane %v249, %v289
        %vm291 = vcmask 261312
        %v292 = vsel %vm291, %v290, %v285
        %v293 = vlaneseq
        %v294 = vshrl.u32 %v293, 7
        %v295 = vsub.s32 %v267, %v294
        %v296 = vrot.slane %v251, %v295
        %v297 = vlaneseq
        %v298 = vshrl.u32 %v297, 7
        %v299 = vsub.s32 %v272, %v298
        %v300 = vrot.slane %v253, %v299
        %v301 = vsel %vm277, %v300, %v296
        %v302 = vlaneseq
        %v303 = vshrl.u32 %v302, 7
        %v304 = vsub.s32 %v279, %v303
        %v305 = vrot.slane %v255, %v304
        %v306 = vsel %vm284, %v305, %v301
        %v307 = vlaneseq
        %v308 = vshrl.u32 %v307, 7
        %v309 = vsub.s32 %v286, %v308
        %v310 = vrot.slane %v257, %v309
        %v311 = vsel %vm291, %v310, %v306
        %vm312 = vcmask 1041409
        %v313 = vsel %vm312, %v311, %v292
        %v315 = vadd.f32 %v241, %v313
        %vm316 = vcmask 254976
        %317 = vst.msk [vmem:[#allocation2] sm:$0x3] %vm316, %v315
        %v318 = vld [vmem:[#allocation3] sm:$0x3]
        %319 = vmax.xlane.f32.xlu0 %v233
        %v320 = vpop.xlane.xlu0 %319
        %321 = vmax.xlane.f32.xlu0 %v234
        %v322 = vpop.xlane.xlu0 %321
        %323 = vmax.xlane.f32.xlu0 %v235
        %v324 = vpop.xlane.xlu0 %323
        %325 = vmax.xlane.f32.xlu0 %v236
        %v326 = vpop.xlane.xlu0 %325
        %327 = vmax.xlane.f32.xlu0 %v237
        %v328 = vpop.xlane.xlu0 %327
        %329 = vmax.xlane.f32.xlu0 %v238
        %v330 = vpop.xlane.xlu0 %329
        %331 = vmax.xlane.f32.xlu0 %v239
        %v332 = vpop.xlane.xlu0 %331
        %333 = vmax.xlane.f32.xlu0 %v240
        %v334 = vpop.xlane.xlu0 %333
        %v343 = vlaneseq
        %v344 = vshrl.u32 %v343, 7
        %v345 = vsub.s32 %v267, %v344
        %v346 = vrot.slane %v320, %v345
        %v347 = vlaneseq
        %v348 = vshrl.u32 %v347, 7
        %v349 = vsub.s32 %v272, %v348
        %v350 = vrot.slane %v322, %v349
        %v351 = vsel %vm277, %v350, %v346
        %v352 = vlaneseq
        %v353 = vshrl.u32 %v352, 7
        %v354 = vsub.s32 %v279, %v353
        %v355 = vrot.slane %v324, %v354
        %v356 = vsel %vm284, %v355, %v351
        %v357 = vlaneseq
        %v358 = vshrl.u32 %v357, 7
        %v359 = vsub.s32 %v286, %v358
        %v360 = vrot.slane %v326, %v359
        %v361 = vsel %vm291, %v360, %v356
        %v362 = vlaneseq
        %v363 = vshrl.u32 %v362, 7
        %v364 = vsub.s32 %v267, %v363
        %v365 = vrot.slane %v328, %v364
        %v366 = vlaneseq
        %v367 = vshrl.u32 %v366, 7
        %v368 = vsub.s32 %v272, %v367
        %v369 = vrot.slane %v330, %v368
        %v370 = vsel %vm277, %v369, %v365
        %v371 = vlaneseq
        %v372 = vshrl.u32 %v371, 7
        %v373 = vsub.s32 %v279, %v372
        %v374 = vrot.slane %v332, %v373
        %v375 = vsel %vm284, %v374, %v370
        %v376 = vlaneseq
        %v377 = vshrl.u32 %v376, 7
        %v378 = vsub.s32 %v286, %v377
        %v379 = vrot.slane %v334, %v378
        %v380 = vsel %vm291, %v379, %v375
        %v381 = vsel %vm312, %v380, %v361
        %v383 = vmax.f32 %v318, %v381
        %384 = vst.msk [vmem:[#allocation3] sm:$0x3] %vm316, %v383
        %p385 = scmp.eq.s32.totalorder %s24, 1
        // Predicated region
        $region49: #{tpu_custom_call.1} parent=31 // pred_check
          %p386 = pneg %p385
        $region50: #{tpu_custom_call.1} parent=31 // pred_check_branch
          %388 = sbr.rel (%p386) target = $region52
        $region51: #{tpu_custom_call.1} parent=31 // pred_region
          %v389 = vld [vmem:[#allocation2] sm:$0x3]
          %v390 = vmul.f32 %v389, 0.00390625
          %v391 = vld [vmem:[#allocation3] sm:$0x3]
          %v393 = vrot.slane %v391, 6
          %vm395 = vcmask 1041408
          %v396 = vsel %vm395, %v390, %v393
          %v397 = vld [vmem:[#allocation7] sm:$0xff]
          %v398 = vld [vmem:[#allocation7 + $0x8] sm:$0xff]
          %v399 = vld [vmem:[#allocation7 + $0x10] sm:$0xff]
          %v400 = vld [vmem:[#allocation7 + $0x18] sm:$0xff]
          %vm401 = vcmask 261120
          %v403 = vsel %vm401, %v396, 0
          %405 = vmatprep.subr.mxu0 0.0
          %406 = vmatpush1.msra.mxu0 %v397
          %407 = vmatprep.subr.mxu0 0.0
          %408 = vmatpush1.msra.mxu0 %v398
          %409 = vmatprep.subr.mxu0 0.0
          %410 = vmatpush1.msra.mxu0 %v399
          %411 = vmatprep.subr.mxu0 0.0
          %412 = vmatpush1.msra.mxu0 %v400
          %413 = vmatprep.subr.mxu0 0.0
          %414 = vmatpush1.msra.mxu0 0.0
          %415 = vmatprep.subr.mxu0 0.0
          %416 = vmatpush1.msra.mxu0 0.0
          %417 = vmatprep.subr.mxu0 0.0
          %418 = vmatpush1.msra.mxu0 0.0
          %419 = vmatprep.subr.mxu0 0.0
          %420 = vmatpush1.msra.mxu0 0.0
          %421 = vmatprep.subr.mxu0 0.0
          %422 = vmatpush1.msra.mxu0 0.0
          %423 = vmatprep.subr.mxu0 0.0
          %424 = vmatpush1.msra.mxu0 0.0
          %425 = vmatprep.subr.mxu0 0.0
          %426 = vmatpush1.msra.mxu0 0.0
          %427 = vmatprep.subr.mxu0 0.0
          %428 = vmatpush1.msra.mxu0 0.0
          %429 = vmatprep.subr.mxu0 0.0
          %430 = vmatpush1.msra.mxu0 0.0
          %431 = vmatprep.subr.mxu0 0.0
          %432 = vmatpush1.msra.mxu0 0.0
          %433 = vmatprep.subr.mxu0 0.0
          %434 = vmatpush1.msra.mxu0 0.0
          %435 = vmatprep.subr.mxu0 0.0
          %436 = vmatpush1.msra.mxu0 0.0
          %437 = vmatprep.subr.mxu0 0.0
          %438 = vmatpush1.msra.mxu0 0.0
          %439 = vmatprep.subr.mxu0 0.0
          %440 = vmatpush1.msra.mxu0 0.0
          %441 = vmatprep.subr.mxu0 0.0
          %442 = vmatpush1.msra.mxu0 0.0
          %443 = vmatprep.subr.mxu0 0.0
          %444 = vmatpush1.msra.mxu0 0.0
          %445 = vmatprep.subr.mxu0 0.0
          %446 = vmatpush1.msra.mxu0 0.0
          %447 = vmatprep.subr.mxu0 0.0
          %448 = vmatpush1.msra.mxu0 0.0
          %449 = vmatprep.subr.mxu0 0.0
          %450 = vmatpush1.msra.mxu0 0.0
          %451 = vmatprep.subr.mxu0 0.0
          %452 = vmatpush1.msra.mxu0 0.0
          %453 = vmatprep.subr.mxu0 0.0
          %454 = vmatpush1.msra.mxu0 0.0
          %455 = vmatprep.subr.mxu0 0.0
          %456 = vmatpush1.msra.mxu0 0.0
          %457 = vmatprep.subr.mxu0 0.0
          %458 = vmatpush1.msra.mxu0 0.0
          %459 = vmatprep.subr.mxu0 0.0
          %460 = vmatpush1.msra.mxu0 0.0
          %461 = vmatprep.subr.mxu0 0.0
          %462 = vmatpush1.msra.mxu0 0.0
          %463 = vmatprep.subr.mxu0 0.0
          %464 = vmatpush1.msra.mxu0 0.0
          %465 = vmatprep.subr.mxu0 0.0
          %466 = vmatpush1.msra.mxu0 0.0
          %467 = vmatprep.subr.mxu0 0.0
          %468 = vmatpush1.msra.mxu0 0.0
          %469 = vmatprep.mubr.f32.mxu0 0.0
          %470 = vmatmul.mubr.f32.gmra.mrb[0].mxu0 %v403
          %v471 = vpop.f32.mrb[0].mxu0
          %v472 = vadd.f32 0.0, %v471
          %v473 = vpop.f32.mrb[0].mxu0
          %474 = vdwg.mxu0
          %v475 = vmax.f32 %v472, 0.0
          %v476 = vld [vmem:[#allocation9] sm:$0x3]
          %vm477 = vcmask 15360
          %v479 = vsel %vm477, %v475, 0
          %v482 = vsel %vm395, %v476, 0
          %484 = vmatprep.subr.mxu0 0.0
          %485 = vmatpush1.msra.mxu0 %v482
          %486 = vmatprep.subr.mxu0 0.0
          %487 = vmatpush1.msra.mxu0 0.0
          %488 = vmatprep.subr.mxu0 0.0
          %489 = vmatpush1.msra.mxu0 0.0
          %490 = vmatprep.subr.mxu0 0.0
          %491 = vmatpush1.msra.mxu0 0.0
          %492 = vmatprep.subr.mxu0 0.0
          %493 = vmatpush1.msra.mxu0 0.0
          %494 = vmatprep.subr.mxu0 0.0
          %495 = vmatpush1.msra.mxu0 0.0
          %496 = vmatprep.subr.mxu0 0.0
          %497 = vmatpush1.msra.mxu0 0.0
          %498 = vmatprep.subr.mxu0 0.0
          %499 = vmatpush1.msra.mxu0 0.0
          %500 = vmatprep.subr.mxu0 0.0
          %501 = vmatpush1.msra.mxu0 0.0
          %502 = vmatprep.subr.mxu0 0.0
          %503 = vmatpush1.msra.mxu0 0.0
          %504 = vmatprep.subr.mxu0 0.0
          %505 = vmatpush1.msra.mxu0 0.0
          %506 = vmatprep.subr.mxu0 0.0
          %507 = vmatpush1.msra.mxu0 0.0
          %508 = vmatprep.subr.mxu0 0.0
          %509 = vmatpush1.msra.mxu0 0.0
          %510 = vmatprep.subr.mxu0 0.0
          %511 = vmatpush1.msra.mxu0 0.0
          %512 = vmatprep.subr.mxu0 0.0
          %513 = vmatpush1.msra.mxu0 0.0
          %514 = vmatprep.subr.mxu0 0.0
          %515 = vmatpush1.msra.mxu0 0.0
          %516 = vmatprep.subr.mxu0 0.0
          %517 = vmatpush1.msra.mxu0 0.0
          %518 = vmatprep.subr.mxu0 0.0
          %519 = vmatpush1.msra.mxu0 0.0
          %520 = vmatprep.subr.mxu0 0.0
          %521 = vmatpush1.msra.mxu0 0.0
          %522 = vmatprep.subr.mxu0 0.0
          %523 = vmatpush1.msra.mxu0 0.0
          %524 = vmatprep.subr.mxu0 0.0
          %525 = vmatpush1.msra.mxu0 0.0
          %526 = vmatprep.subr.mxu0 0.0
          %527 = vmatpush1.msra.mxu0 0.0
          %528 = vmatprep.subr.mxu0 0.0
          %529 = vmatpush1.msra.mxu0 0.0
          %530 = vmatprep.subr.mxu0 0.0
          %531 = vmatpush1.msra.mxu0 0.0
          %532 = vmatprep.subr.mxu0 0.0
          %533 = vmatpush1.msra.mxu0 0.0
          %534 = vmatprep.subr.mxu0 0.0
          %535 = vmatpush1.msra.mxu0 0.0
          %536 = vmatprep.subr.mxu0 0.0
          %537 = vmatpush1.msra.mxu0 0.0
          %538 = vmatprep.subr.mxu0 0.0
          %539 = vmatpush1.msra.mxu0 0.0
          %540 = vmatprep.subr.mxu0 0.0
          %541 = vmatpush1.msra.mxu0 0.0
          %542 = vmatprep.subr.mxu0 0.0
          %543 = vmatpush1.msra.mxu0 0.0
          %544 = vmatprep.subr.mxu0 0.0
          %545 = vmatpush1.msra.mxu0 0.0
          %546 = vmatprep.subr.mxu0 0.0
          %547 = vmatpush1.msra.mxu0 0.0
          %548 = vmatprep.mubr.f32.mxu0 0.0
          %549 = vmatmul.mubr.f32.gmra.mrb[0].mxu0 %v479
          %v550 = vpop.f32.mrb[0].mxu0
          %v551 = vadd.f32 0.0, %v550
          %v552 = vpop.f32.mrb[0].mxu0
          %553 = vdwg.mxu0
          %v555 = vrot.slane %v551, 2
          %v557 = vadd.f32 %v551, %v555
          %v558 = vxor.u32 %v557, 2147483648
          %v559 = vmul.f32 %v558, 1.442695
          %v560 = vpow.pop %v559
          %v561 = vadd.f32 %v560, 1.0
          %v562 = vrcp.pop %v561
          %v563 = vmul.f32 1.0, %v562
          %564 = vst.msk [vmem:[#allocation10] sm:$0x3] %vm316, %v563
        $region52: #{tpu_custom_call.1} parent=31 // pred_fallthru
          _
        // Predicated region
        $region53: #{tpu_custom_call.1} parent=31 // pred_check
          %p565 = pneg %p119
        $region54: #{tpu_custom_call.1} parent=31 // pred_check_branch
          %567 = sbr.rel (%p565) target = $region56
        $region55: #{tpu_custom_call.1} parent=31 // pred_region
          %s569 = ssub.s32 32, 32
          %570 = vsyncadd [#allocation6], %s569
          %s571 = smul.addr %s23, 32
          %s572 = scalar_lea.hbm %s3, %s571
          %s574 = sshll.u32 [#allocation10], 4
          %s575 = int_to_ptr.vmem [resolvable:$true] %s574
          %577 = dma.vmem_to_hbm [thread:$0]  %s575, 32, %s572, [#allocation6]
        $region56: #{tpu_custom_call.1} parent=31 // pred_fallthru
          _
        // Predicated region
        $region57: #{tpu_custom_call.1} parent=31 // pred_check
          %p578 = pneg %p119
        $region58: #{tpu_custom_call.1} parent=31 // pred_check_branch
          %580 = sbr.rel (%p578) target = $region60
        $region59: #{tpu_custom_call.1} parent=31 // pred_region
          %581 = dma.done [#allocation6], 32
        $region60: #{tpu_custom_call.1} parent=31 // pred_fallthru
          _
      $region32: #{tpu_custom_call.1} parent=5 // pred_fallthru
        _
      %p582 = scmp.le.s32.totalorder 2, %s14
      // Predicated region
      $region61: #{tpu_custom_call.1} parent=5 // pred_check
        %p583 = pneg %p582
      $region62: #{tpu_custom_call.1} parent=5 // pred_check_branch
        %585 = sbr.rel (%p583) target = $region64
      $region63: #{tpu_custom_call.1} parent=5 // pred_region
        %s586 = ssub.s32 %s14, 2
      $region64: #{tpu_custom_call.1} parent=5 // pred_fallthru
        _
    $region6: #{tpu_custom_call.1} parent=1 // loop_footer
      %s18 = sadd.s32 1, %s14
    $region7: #{tpu_custom_call.1} parent=1 // loop_footer_branch
      %13 = sbr.rel target = $region3
    $region8: #{tpu_custom_call.1} parent=1 // loop_exit
      _
    %587 = vsyncpa [#allocation5], 1
    %s588 = scalar_lea.sflag [#allocation5], 1
    %589 = vsyncpa %s588, 1
    %590 = vsyncpa [#allocation8], 1
    %591 = vsyncpa [#allocation6], 1
    %s592 = scalar_lea.sflag [#allocation6], 1
    %593 = vsyncpa %s592, 1

</llo_original>
